<compile_context>
chip_gen: v6e
topology: v6e:2x2x1
jax: 0.10.0
libtpu: 0.0.40
codegen_flags: <defaults>
</compile_context>

<pallas_src>
import jax
import jax.numpy as jnp
from jax.experimental import pallas as pl
from jax.experimental.pallas import tpu as pltpu

NEG_SLOPE_ATT = 0.2     # LeakyReLU slope inside GeneralConv's additive attention
MASK_VALUE = -1e30


# --------------------------------------------------------------------------- #
# Hoisted, call-once parameter transform (kept OUT of the per-forward path).
# --------------------------------------------------------------------------- #
def prepare_params(w_msg, b_msg, att_msg):
    """Fold the additive-attention dot into the projection: w_aug = [W | W@att]."""
    att_col = att_msg.reshape(-1, 1)                              # (C_out, 1)
    w_aug = jnp.concatenate([w_msg, w_msg @ att_col], axis=1)     # (C_in, C_out+1)
    b_aug = jnp.concatenate([b_msg, b_msg @ att_col], axis=1)     # (1,    C_out+1)
    return w_aug, b_aug


# --------------------------------------------------------------------------- #
# Fused kernel body (shared by the gridless and the batched entry points).
# --------------------------------------------------------------------------- #
def _general_conv_kernel(x_ref, adj_ref, w_ref, b_ref, out_ref):
    n = x_ref.shape[0]
    c_in = x_ref.shape[1]
    c = out_ref.shape[-1] // 4          # out_channels (heads == 1)

    x = x_ref[...]                      # (N, C_in)
    w = w_ref[...]                      # (C_in, C+1)  = [W | W@att]
    adj = adj_ref[...]                  # (N_dst, N_src) in {0,1}

    # --- projection + attention logit: unrolled VPU broadcast-FMAs ----------
    ha = x[:, 0:1] * w[0:1, :]
    for k in range(1, c_in):
        ha = ha + x[:, k:k + 1] * w[k:k + 1, :]
    ha = ha + b_ref[...]                                            # (N, C+1)
    h = ha[:, :c]                                                   # lin_msg(x_j)

    # One small XLU transpose: channel-major h and the logit as a source row.
    hat = ha.T                                                      # (C+1, N)
    ht = hat[:c, :]                                                 # (C, N)
    logit_row = hat[c:c + 1, :]                                     # (1, N_src)
    lo_row = jnp.maximum(logit_row, NEG_SLOPE_ATT * logit_row)      # LeakyReLU(0.2)

    # --- masked per-target softmax over incoming edges (sources on lanes) ---
    mask = adj > 0.0
    neg = jnp.where(mask, 0.0, MASK_VALUE)       # additive mask bias (reused below)
    e = lo_row + neg                             # (N_dst, N_src)
    m = jnp.max(e, axis=-1, keepdims=True)       # per-row max (numerically safe)
    p = jnp.exp(e - m)                           # masked entries underflow to 0

    # --- ONE MXU push for every sum-type reduction --------------------------
    #   [p; adj] @ [h | 1]:
    #     rows 0..N-1  -> [ sum_j p_ij * h_j  |  softmax denominator ]
    #     rows N..2N-1 -> [     (unused)      |  in-degree           ]
    ones_col = jnp.ones((n, 1), jnp.float32)
    h_ones = jnp.concatenate([h, ones_col], axis=-1)                # (N, C+1)
    pa = jnp.concatenate([p, adj], axis=0)                          # (2N, N)
    ps = jnp.dot(pa, h_ones, preferred_element_type=jnp.float32)    # (2N, C+1)
    ph = ps[:n, :c]                                                 # sum_j p_ij h_j
    denom = ps[:n, c:c + 1]                                         # sum_j p_ij
    deg = ps[n:, c:c + 1]                                           # in-degree

    inv_denom = 1.0 / denom                      # exact: attention rows sum to 1
    alpha = p * inv_denom                        # (N_dst, N_src) edge weights
    s_sum = ph * inv_denom                                          # 'sum'
    s_mean = s_sum / jnp.maximum(deg, 1.0)                          # 'mean'

    # --- 'max' / 'min': per-channel masked lane reductions (C tiny, unrolled)
    maxs, mins = [], []
    for ch in range(c):
        wc = alpha * ht[ch:ch + 1, :]                               # (N_dst, N_src)
        maxs.append(jnp.max(wc + neg, axis=-1, keepdims=True))
        mins.append(jnp.min(wc - neg, axis=-1, keepdims=True))
    s_max = jnp.concatenate(maxs, axis=-1)                          # (N, C)
    s_min = jnp.concatenate(mins, axis=-1)                          # (N, C)

    # MultiAggregation(mode='cat') order: ['mean', 'max', 'sum', 'min']
    agg = jnp.concatenate([s_mean, s_max, s_sum, s_min], axis=-1)   # (N, 4C)
    # Isolated targets (in-degree 0) aggregate to 0 (PyG scatter semantics).
    agg = jnp.where(deg > 0.0, agg, jnp.zeros_like(agg))

    # heads == 1, so `out.mean(dim=1)` in the reference is the identity.
    # TODO(synk): the PyG reference `out + self.lin_self(x_self)` (lin_self =
    # Identity here) would raise a shape error ([N,4C] + [N,C]) with cat-mode
    # MultiAggregation; we apply the intended residual to each aggregator block.
    skip = jnp.concatenate([x, x, x, x], axis=-1)                   # (N, 4C)
    out_ref[...] = agg + skip                                       # single store


# --------------------------------------------------------------------------- #
# Wrappers.
# --------------------------------------------------------------------------- #
def _vmem():
    return pl.BlockSpec(memory_space=pltpu.MemorySpace.VMEM)


@jax.jit
def general_conv_forward(x, adj, w_aug, b_aug):
    """Single-graph forward: one gridless fused pallas_call (N=16 is launch-bound)."""
    n = x.shape[0]
    c = w_aug.shape[1] - 1
    return pl.pallas_call(
        _general_conv_kernel,
        out_shape=jax.ShapeDtypeStruct((n, 4 * c), jnp.float32),
        in_specs=[_vmem()] * 4,
        out_specs=_vmem(),
    )(x, adj, w_aug, b_aug)


@jax.jit
def general_conv_forward_batched(x, adj, w_aug, b_aug):
    """Many independent small graphs per pallas_call (amortizes launch overhead;
    'parallel' batch axis lets v7x's two TensorCores split the grid)."""
    bsz, n, c_in = x.shape
    c = w_aug.shape[1] - 1
    grid_spec = pltpu.PrefetchScalarGridSpec(
        num_scalar_prefetch=0,
        grid=(bsz,),
        in_specs=[
            pl.BlockSpec((None, n, c_in), lambda i: (i, 0, 0)),
            pl.BlockSpec((None, n, n), lambda i: (i, 0, 0)),
            pl.BlockSpec((c_in, c + 1), lambda i: (0, 0)),
            pl.BlockSpec((1, c + 1), lambda i: (0, 0)),
        ],
        out_specs=pl.BlockSpec((None, n, 4 * c), lambda i: (i, 0, 0)),
    )
    return pl.pallas_call(
        _general_conv_kernel,
        out_shape=jax.ShapeDtypeStruct((bsz, n, 4 * c), jnp.float32),
        grid_spec=grid_spec,
        compiler_params=pltpu.CompilerParams(dimension_semantics=("parallel",)),
    )(x, adj, w_aug, b_aug)


# --------------------------------------------------------------------------- #
# Pure-JAX edge-level reference (mirrors PyG message/softmax/scatter path).
# --------------------------------------------------------------------------- #
def reference_forward(x, edge_index, w_msg, b_msg, att_msg):
    n, _ = x.shape
    src, dst = edge_index[0], edge_index[1]
    h = x @ w_msg + b_msg                                      # lin_msg
    hj = h[src]                                                # (E, C) messages
    logit = (hj * att_msg.reshape(1, -1)).sum(-1)              # (E,)
    logit = jnp.where(logit > 0, logit, NEG_SLOPE_ATT * logit)
    m = jax.ops.segment_max(logit, dst, num_segments=n)
    p = jnp.exp(logit - m[dst])
    denom = jax.ops.segment_sum(p, dst, num_segments=n)
    alpha = p / denom[dst]
    msg = hj * alpha[:, None]
    a_sum = jax.ops.segment_sum(msg, dst, num_segments=n)
    deg = jax.ops.segment_sum(jnp.ones_like(alpha), dst, num_segments=n)
    a_mean = a_sum / jnp.maximum(deg, 1.0)[:, None]
    a_max = jax.ops.segment_max(msg, dst, num_segments=n)
    a_min = jax.ops.segment_min(msg, dst, num_segments=n)
    valid = (deg > 0)[:, None]
    zero = jnp.zeros_like(a_sum)
    a_mean, a_max = jnp.where(valid, a_mean, zero), jnp.where(valid, a_max, zero)
    a_sum, a_min = jnp.where(valid, a_sum, zero), jnp.where(valid, a_min, zero)
    out = jnp.concatenate([a_mean, a_max, a_sum, a_min], axis=-1)
    return out + jnp.concatenate([x, x, x, x], axis=-1)


if __name__ == "__main__":
    N, C_IN, C_OUT = 16, 3, 3        # module defaults: input=3, output=3

    # Deterministic simple directed graph: 3 incoming edges per node, no duplicate
    # edges, no self-loops (GeneralConv does not add self-loops).
    src, dst = [], []
    for i in range(N):
        for d in (1, 3, 7):
            src.append((i + d) % N)
            dst.append(i)
    edge_index = jnp.array([src, dst], dtype=jnp.int32)               # (2, 48)

    # Dense {0,1} mask: adj[target, source] = 1 for each edge source -> target.
    adj = jnp.zeros((N, N), jnp.float32).at[edge_index[1], edge_index[0]].set(1.0)

    key = jax.random.PRNGKey(0)
    k_x, k_w, k_b, k_a, k_xb = jax.random.split(key, 5)
    x = jax.random.normal(k_x, (N, C_IN), dtype=jnp.float32)

    def glorot(k, shape):
        fan_in, fan_out = shape[0], shape[-1]
        lim = (6.0 / (fan_in + fan_out)) ** 0.5
        return jax.random.uniform(k, shape, jnp.float32, -lim, lim)

    w_msg = glorot(k_w, (C_IN, C_OUT))                                  # lin_msg weight (transposed)
    lim = 1.0 / (C_IN ** 0.5)
    b_msg = jax.random.uniform(k_b, (1, C_OUT), jnp.float32, -lim, lim)  # lin_msg bias
    att_msg = glorot(k_a, (1, C_OUT))                                   # att_msg (heads=1)

    # Hoisted parameter transform: runs ONCE, outside the jitted forward path.
    w_aug, b_aug = prepare_params(w_msg, b_msg, att_msg)

    # ---- single-graph forward (gridless) -----------------------------------
    out = general_conv_forward(x, adj, w_aug, b_aug)
    jax.block_until_ready(out)

    ref = reference_forward(x, edge_index, w_msg, b_msg, att_msg)
    assert out.shape == (N, 4 * C_OUT) and out.dtype == jnp.float32
    assert bool(jnp.all(jnp.isfinite(out)))
    assert bool(jnp.allclose(out, ref, rtol=1e-4, atol=1e-4)), \
        float(jnp.max(jnp.abs(out - ref)))

    # ---- batched forward: B independent graphs in one pallas_call ----------
    B = 4
    xb = jax.random.normal(k_xb, (B, N, C_IN), dtype=jnp.float32)
    adjb = jnp.broadcast_to(adj, (B, N, N))
    outb = general_conv_forward_batched(xb, adjb, w_aug, b_aug)
    jax.block_until_ready(outb)
    assert outb.shape == (B, N, 4 * C_OUT)
    for bi in range(B):
        refb = reference_forward(xb[bi], edge_index, w_msg, b_msg, att_msg)
        assert bool(jnp.allclose(outb[bi], refb, rtol=1e-4, atol=1e-4)), \
            (bi, float(jnp.max(jnp.abs(outb[bi] - refb))))

    print("KERNEL_OK")
</pallas_src>

<mosaic_0001>
module attributes {stable_mosaic.version = 11 : i64} {
  func.func @_general_conv_kernel(%arg0: memref<16x3xf32, #tpu.memory_space<vmem>>, %arg1: memref<16x16xf32, #tpu.memory_space<vmem>>, %arg2: memref<3x4xf32, #tpu.memory_space<vmem>>, %arg3: memref<1x4xf32, #tpu.memory_space<vmem>>, %arg4: memref<16x12xf32, #tpu.memory_space<vmem>>) attributes {dimension_semantics = [], scalar_prefetch = 0 : i64, scratch_operands = 0 : i64, tpu.core_type = #tpu.core_type<tc>} {
    %c0 = arith.constant 0 : index
    %c0_0 = arith.constant 0 : index
    %0 = vector.load %arg0[%c0, %c0_0] : memref<16x3xf32, #tpu.memory_space<vmem>>, vector<16x3xf32>
    %c0_1 = arith.constant 0 : index
    %c0_2 = arith.constant 0 : index
    %1 = vector.load %arg2[%c0_1, %c0_2] : memref<3x4xf32, #tpu.memory_space<vmem>>, vector<3x4xf32>
    %c0_3 = arith.constant 0 : index
    %c0_4 = arith.constant 0 : index
    %2 = vector.load %arg1[%c0_3, %c0_4] : memref<16x16xf32, #tpu.memory_space<vmem>>, vector<16x16xf32>
    %3 = vector.extract_strided_slice %0 {offsets = [0, 0], sizes = [16, 1], strides = [1, 1]} : vector<16x3xf32> to vector<16x1xf32>
    %4 = vector.extract_strided_slice %1 {offsets = [0, 0], sizes = [1, 4], strides = [1, 1]} : vector<3x4xf32> to vector<1x4xf32>
    %5 = vector.broadcast %3 : vector<16x1xf32> to vector<16x4xf32>
    %6 = vector.broadcast %4 : vector<1x4xf32> to vector<16x4xf32>
    %7 = arith.mulf %5, %6 : vector<16x4xf32>
    %8 = vector.extract_strided_slice %0 {offsets = [0, 1], sizes = [16, 1], strides = [1, 1]} : vector<16x3xf32> to vector<16x1xf32>
    %9 = vector.extract_strided_slice %1 {offsets = [1, 0], sizes = [1, 4], strides = [1, 1]} : vector<3x4xf32> to vector<1x4xf32>
    %10 = vector.broadcast %8 : vector<16x1xf32> to vector<16x4xf32>
    %11 = vector.broadcast %9 : vector<1x4xf32> to vector<16x4xf32>
    %12 = arith.mulf %10, %11 : vector<16x4xf32>
    %13 = arith.addf %7, %12 : vector<16x4xf32>
    %14 = vector.extract_strided_slice %0 {offsets = [0, 2], sizes = [16, 1], strides = [1, 1]} : vector<16x3xf32> to vector<16x1xf32>
    %15 = vector.extract_strided_slice %1 {offsets = [2, 0], sizes = [1, 4], strides = [1, 1]} : vector<3x4xf32> to vector<1x4xf32>
    %16 = vector.broadcast %14 : vector<16x1xf32> to vector<16x4xf32>
    %17 = vector.broadcast %15 : vector<1x4xf32> to vector<16x4xf32>
    %18 = arith.mulf %16, %17 : vector<16x4xf32>
    %19 = arith.addf %13, %18 : vector<16x4xf32>
    %c0_5 = arith.constant 0 : index
    %c0_6 = arith.constant 0 : index
    %20 = vector.load %arg3[%c0_5, %c0_6] : memref<1x4xf32, #tpu.memory_space<vmem>>, vector<1x4xf32>
    %21 = vector.broadcast %20 : vector<1x4xf32> to vector<16x4xf32>
    %22 = arith.addf %19, %21 : vector<16x4xf32>
    %23 = vector.extract_strided_slice %22 {offsets = [0, 0], sizes = [16, 3], strides = [1, 1]} : vector<16x4xf32> to vector<16x3xf32>
    %24 = tpu.transpose %22, [1, 0] : vector<16x4xf32> -> vector<4x16xf32>
    %25 = vector.extract_strided_slice %24 {offsets = [0, 0], sizes = [3, 16], strides = [1, 1]} : vector<4x16xf32> to vector<3x16xf32>
    %26 = vector.extract_strided_slice %24 {offsets = [3, 0], sizes = [1, 16], strides = [1, 1]} : vector<4x16xf32> to vector<1x16xf32>
    %cst = arith.constant 2.000000e-01 : f32
    %27 = vector.broadcast %cst : f32 to vector<1x16xf32>
    %28 = arith.mulf %27, %26 : vector<1x16xf32>
    %29 = arith.maximumf %26, %28 : vector<1x16xf32>
    %cst_7 = arith.constant 0.000000e+00 : f32
    %30 = vector.broadcast %cst_7 : f32 to vector<16x16xf32>
    %31 = arith.cmpf ogt, %2, %30 : vector<16x16xf32>
    %cst_8 = arith.constant 0.000000e+00 : f32
    %cst_9 = arith.constant -1.000000e+30 : f32
    %32 = vector.broadcast %cst_8 : f32 to vector<16x16xf32>
    %33 = vector.broadcast %cst_9 : f32 to vector<16x16xf32>
    %34 = arith.select %31, %32, %33 : vector<16x16xi1>, vector<16x16xf32>
    %35 = vector.broadcast %29 : vector<1x16xf32> to vector<16x16xf32>
    %36 = arith.addf %35, %34 : vector<16x16xf32>
    %cst_10 = arith.constant dense<0xFF800000> : vector<16xf32>
    %37 = vector.multi_reduction <maximumf>, %36, %cst_10 [1] : vector<16x16xf32> to vector<16xf32>
    %38 = vector.shape_cast %37 : vector<16xf32> to vector<16x1xf32>
    %39 = vector.broadcast %38 : vector<16x1xf32> to vector<16x16xf32>
    %40 = arith.subf %36, %39 : vector<16x16xf32>
    %41 = math.exp %40 : vector<16x16xf32>
    %cst_11 = arith.constant 1.000000e+00 : f32
    %42 = vector.broadcast %cst_11 : f32 to vector<16x1xf32>
    %43 = tpu.concatenate %23, %42 in 1 : vector<16x3xf32>, vector<16x1xf32> -> vector<16x4xf32>
    %44 = tpu.concatenate %41, %2 in 0 : vector<16x16xf32>, vector<16x16xf32> -> vector<32x16xf32>
    %cst_12 = arith.constant dense<0.000000e+00> : vector<32x4xf32>
    %45 = tpu.matmul %44, %43, %cst_12 {dimension_numbers = #tpu.dot_dimension_numbers<[1], [0], [0], [1], [0, 0, 1, 1], [], []>} : vector<32x16xf32>, vector<16x4xf32>, vector<32x4xf32> -> vector<32x4xf32>
    %46 = vector.extract_strided_slice %45 {offsets = [0, 0], sizes = [16, 3], strides = [1, 1]} : vector<32x4xf32> to vector<16x3xf32>
    %47 = vector.extract_strided_slice %45 {offsets = [0, 3], sizes = [16, 1], strides = [1, 1]} : vector<32x4xf32> to vector<16x1xf32>
    %48 = vector.extract_strided_slice %45 {offsets = [16, 3], sizes = [16, 1], strides = [1, 1]} : vector<32x4xf32> to vector<16x1xf32>
    %cst_13 = arith.constant 1.000000e+00 : f32
    %49 = vector.broadcast %cst_13 : f32 to vector<16x1xf32>
    %50 = arith.divf %49, %47 : vector<16x1xf32>
    %51 = vector.broadcast %50 : vector<16x1xf32> to vector<16x16xf32>
    %52 = arith.mulf %41, %51 : vector<16x16xf32>
    %53 = vector.broadcast %50 : vector<16x1xf32> to vector<16x3xf32>
    %54 = arith.mulf %46, %53 : vector<16x3xf32>
    %cst_14 = arith.constant 1.000000e+00 : f32
    %55 = vector.broadcast %cst_14 : f32 to vector<16x1xf32>
    %56 = arith.maximumf %48, %55 : vector<16x1xf32>
    %57 = vector.broadcast %56 : vector<16x1xf32> to vector<16x3xf32>
    %58 = arith.divf %54, %57 : vector<16x3xf32>
    %59 = vector.extract_strided_slice %25 {offsets = [0, 0], sizes = [1, 16], strides = [1, 1]} : vector<3x16xf32> to vector<1x16xf32>
    %60 = vector.broadcast %59 : vector<1x16xf32> to vector<16x16xf32>
    %61 = arith.mulf %52, %60 : vector<16x16xf32>
    %62 = arith.addf %61, %34 : vector<16x16xf32>
    %cst_15 = arith.constant dense<0xFF800000> : vector<16xf32>
    %63 = vector.multi_reduction <maximumf>, %62, %cst_15 [1] : vector<16x16xf32> to vector<16xf32>
    %64 = vector.shape_cast %63 : vector<16xf32> to vector<16x1xf32>
    %65 = arith.subf %61, %34 : vector<16x16xf32>
    %cst_16 = arith.constant dense<0x7F800000> : vector<16xf32>
    %66 = vector.multi_reduction <minimumf>, %65, %cst_16 [1] : vector<16x16xf32> to vector<16xf32>
    %67 = vector.shape_cast %66 : vector<16xf32> to vector<16x1xf32>
    %68 = vector.extract_strided_slice %25 {offsets = [1, 0], sizes = [1, 16], strides = [1, 1]} : vector<3x16xf32> to vector<1x16xf32>
    %69 = vector.broadcast %68 : vector<1x16xf32> to vector<16x16xf32>
    %70 = arith.mulf %52, %69 : vector<16x16xf32>
    %71 = arith.addf %70, %34 : vector<16x16xf32>
    %cst_17 = arith.constant dense<0xFF800000> : vector<16xf32>
    %72 = vector.multi_reduction <maximumf>, %71, %cst_17 [1] : vector<16x16xf32> to vector<16xf32>
    %73 = vector.shape_cast %72 : vector<16xf32> to vector<16x1xf32>
    %74 = arith.subf %70, %34 : vector<16x16xf32>
    %cst_18 = arith.constant dense<0x7F800000> : vector<16xf32>
    %75 = vector.multi_reduction <minimumf>, %74, %cst_18 [1] : vector<16x16xf32> to vector<16xf32>
    %76 = vector.shape_cast %75 : vector<16xf32> to vector<16x1xf32>
    %77 = vector.extract_strided_slice %25 {offsets = [2, 0], sizes = [1, 16], strides = [1, 1]} : vector<3x16xf32> to vector<1x16xf32>
    %78 = vector.broadcast %77 : vector<1x16xf32> to vector<16x16xf32>
    %79 = arith.mulf %52, %78 : vector<16x16xf32>
    %80 = arith.addf %79, %34 : vector<16x16xf32>
    %cst_19 = arith.constant dense<0xFF800000> : vector<16xf32>
    %81 = vector.multi_reduction <maximumf>, %80, %cst_19 [1] : vector<16x16xf32> to vector<16xf32>
    %82 = vector.shape_cast %81 : vector<16xf32> to vector<16x1xf32>
    %83 = arith.subf %79, %34 : vector<16x16xf32>
    %cst_20 = arith.constant dense<0x7F800000> : vector<16xf32>
    %84 = vector.multi_reduction <minimumf>, %83, %cst_20 [1] : vector<16x16xf32> to vector<16xf32>
    %85 = vector.shape_cast %84 : vector<16xf32> to vector<16x1xf32>
    %86 = tpu.concatenate %64, %73, %82 in 1 : vector<16x1xf32>, vector<16x1xf32>, vector<16x1xf32> -> vector<16x3xf32>
    %87 = tpu.concatenate %67, %76, %85 in 1 : vector<16x1xf32>, vector<16x1xf32>, vector<16x1xf32> -> vector<16x3xf32>
    %88 = tpu.concatenate %58, %86, %54, %87 in 1 : vector<16x3xf32>, vector<16x3xf32>, vector<16x3xf32>, vector<16x3xf32> -> vector<16x12xf32>
    %cst_21 = arith.constant 0.000000e+00 : f32
    %89 = vector.broadcast %cst_21 : f32 to vector<16x1xf32>
    %90 = arith.cmpf ogt, %48, %89 : vector<16x1xf32>
    %cst_22 = arith.constant 0.000000e+00 : f32
    %91 = vector.broadcast %cst_22 : f32 to vector<16x12xf32>
    %92 = vector.shape_cast %90 : vector<16x1xi1> to vector<16x1xi1>
    %93 = vector.broadcast %92 : vector<16x1xi1> to vector<16x12xi1>
    %94 = arith.select %93, %88, %91 : vector<16x12xi1>, vector<16x12xf32>
    %95 = tpu.concatenate %0, %0, %0, %0 in 1 : vector<16x3xf32>, vector<16x3xf32>, vector<16x3xf32>, vector<16x3xf32> -> vector<16x12xf32>
    %96 = arith.addf %94, %95 : vector<16x12xf32>
    %c0_23 = arith.constant 0 : index
    %c0_24 = arith.constant 0 : index
    %97 = vector.load %arg4[%c0_23, %c0_24] : memref<16x12xf32, #tpu.memory_space<vmem>>, vector<16x12xf32>
    tpu.vector_store %arg4[%c0_23, %c0_24], %96 {strides = array<i32>} : memref<16x12xf32, #tpu.memory_space<vmem>>, vector<16x12xf32>,
    return
  }
}

</mosaic_0001>

<llo_original>
// kernel: general_conv_forward.1
$region0: #{general_conv_forward.1}
  #allocation0 [shape = 'u32[]', space=smem, size = 0x4, offset = 0x4, fixed_abs, tag = 'smem constant byte address 0x4 - core index']
  #allocation1 [shape = 'u32[144,128]{1,0:T(1,128)}', space=vmem, size = 0x12000, scoped, tag = 'internal scratch']
  %s0 = inlined_call_operand.vmem [shape: f32[16,3], index: 0, kind: input, shape index: {}]
  %s1 = inlined_call_operand.vmem [shape: f32[16,16], index: 1, kind: input, shape index: {}]
  %s2 = inlined_call_operand.vmem [shape: f32[3,4], index: 2, kind: input, shape index: {}]
  %s3 = inlined_call_operand.vmem [shape: f32[1,4], index: 3, kind: input, shape index: {}]
  %s4 = inlined_call_operand.hbm [shape: f32[16,12], index: 4, kind: output, shape index: {}]
  %s5 = sld [smem:[#allocation0]]
  $region26: #{general_conv_forward.1} parent=0
    _
  %s7 = ssub.s32 1, %s5
  %s8 = scalar_select 0, %s7, %s5
  $region1: #{general_conv_forward.1} parent=0
    #allocation2 [shape = 'u8[8192]{0}', space=vmem, size = 0x2000, scoped, tag = 'output window, operand 0, single buffered']
    #allocation3 [shape = 's32[1]{0}', space=sflag, size = 0x4, scoped, tag = 'scoped memory for general_conv_forward.1']
    %9 = vsyncpa [#allocation3], 0
    // Predicated region
    $region2: #{general_conv_forward.1} parent=1 // pred_check
      _
    $region3: #{general_conv_forward.1} parent=1 // pred_check_branch
      %11 = sbr.rel (0) target = $region5
    $region4: #{general_conv_forward.1} parent=1 // pred_region
      _
    $region5: #{general_conv_forward.1} parent=1 // pred_fallthru
      _
    // Predicated region
    $region6: #{general_conv_forward.1} parent=1 // pred_check
      _
    $region7: #{general_conv_forward.1} parent=1 // pred_check_branch
      %13 = sbr.rel (0) target = $region9
    $region8: #{general_conv_forward.1} parent=1 // pred_region
      _
    $region9: #{general_conv_forward.1} parent=1 // pred_fallthru
      _
    // Predicated region
    $region10: #{general_conv_forward.1} parent=1 // pred_check
      _
    $region11: #{general_conv_forward.1} parent=1 // pred_check_branch
      %15 = sbr.rel (0) target = $region13
    $region12: #{general_conv_forward.1} parent=1 // pred_region
      _
    $region13: #{general_conv_forward.1} parent=1 // pred_fallthru
      _
    // Predicated region
    $region14: #{general_conv_forward.1} parent=1 // pred_check
      _
    $region15: #{general_conv_forward.1} parent=1 // pred_check_branch
      %17 = sbr.rel (0) target = $region17
    $region16: #{general_conv_forward.1} parent=1 // pred_region
      _
    $region17: #{general_conv_forward.1} parent=1 // pred_fallthru
      _
    %v18 = vld [vmem:[%s0] sm:$0xff]
    %v19 = vld [vmem:[%s0 + $0x8] sm:$0xff]
    %v20 = vld [vmem:[%s2] sm:$0x7]
    %v21 = vld [vmem:[%s1] sm:$0xff]
    %v22 = vld [vmem:[%s1 + $0x8] sm:$0xff]
    %24 = vset.pattern.permute.xlu0 0
    %25 = vperm.xlu0 %24, %v18
    %v26 = vpop.permute.xlu0 %25
    %29 = vset.pattern.permute.xlu0 0
    %30 = vperm.xlu0 %29, %v19
    %v31 = vpop.permute.xlu0 %30
    %v33 = vlaneseq
    %v34 = vshrl.u32 %v33, 7
    %v35 = vsub.s32 0, %v34
    %v36 = vrot.slane %v20, %v35
    %v37 = vmul.f32 %v26, %v36
    %v38 = vmul.f32 %v31, %v36
    %39 = vset.pattern.permute.xlu0 1
    %40 = vperm.xlu0 %39, %v18
    %v41 = vpop.permute.xlu0 %40
    %43 = vset.pattern.permute.xlu0 1
    %44 = vperm.xlu0 %43, %v19
    %v45 = vpop.permute.xlu0 %44
    %v47 = vlaneseq
    %v48 = vshrl.u32 %v47, 7
    %v49 = vsub.s32 1, %v48
    %v50 = vrot.slane %v20, %v49
    %v51 = vmul.f32 %v41, %v50
    %v52 = vmul.f32 %v45, %v50
    %v53 = vadd.f32 %v37, %v51
    %v54 = vadd.f32 %v38, %v52
    %55 = vset.pattern.permute.xlu0 2
    %56 = vperm.xlu0 %55, %v18
    %v57 = vpop.permute.xlu0 %56
    %59 = vset.pattern.permute.xlu0 2
    %60 = vperm.xlu0 %59, %v19
    %v61 = vpop.permute.xlu0 %60
    %v63 = vlaneseq
    %v64 = vshrl.u32 %v63, 7
    %v65 = vsub.s32 2, %v64
    %v66 = vrot.slane %v20, %v65
    %v67 = vmul.f32 %v57, %v66
    %v68 = vmul.f32 %v61, %v66
    %v69 = vadd.f32 %v53, %v67
    %v70 = vadd.f32 %v54, %v68
    %v71 = vld [vmem:[%s3] sm:$0x1]
    %v73 = vlaneseq
    %v74 = vshrl.u32 %v73, 7
    %v75 = vsub.s32 0, %v74
    %v76 = vrot.slane %v71, %v75
    %v78 = vadd.f32 %v69, %v76
    %v79 = vadd.f32 %v70, %v76
    %80 = vxpose.xlu0.b32.start [1/16] %v78, 128
    %81 = vxpose.xlu0.b32.cont [2/16] %v79, 128
    %82 = vxpose.xlu0.b32.cont [3/16] 0.0, 128
    %83 = vxpose.xlu0.b32.cont [4/16] 0.0, 128
    %84 = vxpose.xlu0.b32.cont [5/16] 0.0, 128
    %85 = vxpose.xlu0.b32.cont [6/16] 0.0, 128
    %86 = vxpose.xlu0.b32.cont [7/16] 0.0, 128
    %87 = vxpose.xlu0.b32.cont [8/16] 0.0, 128
    %88 = vxpose.xlu0.b32.cont [9/16] 0.0, 128
    %89 = vxpose.xlu0.b32.cont [10/16] 0.0, 128
    %90 = vxpose.xlu0.b32.cont [11/16] 0.0, 128
    %91 = vxpose.xlu0.b32.cont [12/16] 0.0, 128
    %92 = vxpose.xlu0.b32.cont [13/16] 0.0, 128
    %93 = vxpose.xlu0.b32.cont [14/16] 0.0, 128
    %94 = vxpose.xlu0.b32.cont [15/16] 0.0, 128
    %95 = vxpose.xlu0.b32.end [16/16] 0.0, 128
    %v96 = vpop.trf.xlu0
    %v97 = vpop.trf.xlu0
    %v98 = vpop.trf.xlu0
    %v99 = vpop.trf.xlu0
    %v100 = vpop.trf.xlu0
    %v101 = vpop.trf.xlu0
    %v102 = vpop.trf.xlu0
    %v103 = vpop.trf.xlu0
    %v104 = vpop.trf.xlu0
    %v105 = vpop.trf.xlu0
    %v106 = vpop.trf.xlu0
    %v107 = vpop.trf.xlu0
    %v108 = vpop.trf.xlu0
    %v109 = vpop.trf.xlu0
    %v110 = vpop.trf.xlu0
    %v111 = vpop.trf.xlu0
    %v112 = vmul.f32 %v96, 0.2
    %v113 = vmax.f32 %v96, %v112
    %vm114 = vcmp.gt.f32.partialorder %v21, 0.0
    %vm115 = vcmp.gt.f32.partialorder %v22, 0.0
    %v116 = vsel %vm114, 0.0, -1e+30
    %v117 = vsel %vm115, 0.0, -1e+30
    %v118 = vlaneseq
    %v119 = vshrl.u32 %v118, 7
    %v120 = vsub.s32 3, %v119
    %v121 = vrot.slane %v113, %v120
    %v122 = vadd.f32 %v121, %v116
    %v123 = vadd.f32 %v121, %v117
    %vm124 = vcmask 130048
    %v125 = vsel %vm124, %v122, -inf
    %126 = vmax.xlane.f32.xlu0 %v125
    %v127 = vpop.xlane.xlu0 %126
    %v128 = vsel %vm124, %v123, -inf
    %129 = vmax.xlane.f32.xlu0 %v128
    %v130 = vpop.xlane.xlu0 %129
    %v131 = vsub.f32 %v122, %v127
    %v132 = vsub.f32 %v123, %v130
    %v133 = vmul.f32 %v131, 1.442695
    %v134 = vpow.pop %v133
    %v135 = vmul.f32 %v132, 1.442695
    %v136 = vpow.pop %v135
    %vm137 = vcmask 23552
    %v138 = vsel %vm137, %v78, 1.0
    %v139 = vsel %vm137, %v79, 1.0
    %v141 = vsel %vm124, %v134, 0
    %v144 = vsel %vm124, %v136, 0
    %v147 = vsel %vm124, %v21, 0
    %v150 = vsel %vm124, %v22, 0
    %152 = vmatprep.subr.mxu0 0.0
    %153 = vmatpush1.msra.mxu0 0.0
    %154 = vmatprep.subr.mxu0 0.0
    %155 = vmatpush1.msra.mxu0 0.0
    %156 = vmatprep.subr.mxu0 0.0
    %157 = vmatpush1.msra.mxu0 0.0
    %158 = vmatprep.subr.mxu0 0.0
    %159 = vmatpush1.msra.mxu0 0.0
    %160 = vmatprep.subr.mxu0 0.0
    %161 = vmatpush1.msra.mxu0 0.0
    %162 = vmatprep.subr.mxu0 0.0
    %163 = vmatpush1.msra.mxu0 0.0
    %164 = vmatprep.subr.mxu0 0.0
    %165 = vmatpush1.msra.mxu0 0.0
    %166 = vmatprep.subr.mxu0 0.0
    %167 = vmatpush1.msra.mxu0 0.0
    %168 = vmatprep.subr.mxu0 0.0
    %169 = vmatpush1.msra.mxu0 0.0
    %170 = vmatprep.subr.mxu0 0.0
    %171 = vmatpush1.msra.mxu0 0.0
    %172 = vmatprep.subr.mxu0 0.0
    %173 = vmatpush1.msra.mxu0 0.0
    %174 = vmatprep.subr.mxu0 0.0
    %175 = vmatpush1.msra.mxu0 0.0
    %176 = vmatprep.subr.mxu0 0.0
    %177 = vmatpush1.msra.mxu0 0.0
    %178 = vmatprep.subr.mxu0 0.0
    %179 = vmatpush1.msra.mxu0 0.0
    %180 = vmatprep.subr.mxu0 0.0
    %181 = vmatpush1.msra.mxu0 %v139
    %182 = vmatprep.subr.mxu0 0.0
    %183 = vmatpush1.msra.mxu0 %v138
    %184 = vmatprep.subr.mxu0 0.0
    %185 = vmatpush2.msra.mxu0 0.0
    %186 = vmatprep.subr.mxu0 0.0
    %187 = vmatpush2.msra.mxu0 0.0
    %188 = vmatprep.subr.mxu0 0.0
    %189 = vmatpush2.msra.mxu0 0.0
    %190 = vmatprep.subr.mxu0 0.0
    %191 = vmatpush2.msra.mxu0 0.0
    %192 = vmatprep.subr.mxu0 0.0
    %193 = vmatpush2.msra.mxu0 0.0
    %194 = vmatprep.subr.mxu0 0.0
    %195 = vmatpush2.msra.mxu0 0.0
    %196 = vmatprep.subr.mxu0 0.0
    %197 = vmatpush2.msra.mxu0 0.0
    %198 = vmatprep.subr.mxu0 0.0
    %199 = vmatpush2.msra.mxu0 0.0
    %200 = vmatprep.subr.mxu0 0.0
    %201 = vmatpush2.msra.mxu0 0.0
    %202 = vmatprep.subr.mxu0 0.0
    %203 = vmatpush2.msra.mxu0 0.0
    %204 = vmatprep.subr.mxu0 0.0
    %205 = vmatpush2.msra.mxu0 0.0
    %206 = vmatprep.subr.mxu0 0.0
    %207 = vmatpush2.msra.mxu0 0.0
    %208 = vmatprep.subr.mxu0 0.0
    %209 = vmatpush2.msra.mxu0 0.0
    %210 = vmatprep.subr.mxu0 0.0
    %211 = vmatpush2.msra.mxu0 0.0
    %212 = vmatprep.subr.mxu0 0.0
    %213 = vmatpush2.msra.mxu0 0.0
    %214 = vmatprep.subr.mxu0 0.0
    %215 = vmatpush2.msra.mxu0 0.0
    %216 = vmatprep.mubr.f32.mxu0 0.0
    %217 = vmatmul.mubr.f32.gmra.mxu0 %v141
    %v218 = vpop.f32.mrf.mxu0
    %v219 = vadd.f32 0.0, %v218
    %v220 = vpop.f32.mrf.mxu0
    %221 = vmatprep.mubr.f32.mxu0 0.0
    %222 = vmatmul.mubr.f32.gmra.mxu0 %v144
    %v223 = vpop.f32.mrf.mxu0
    %v224 = vadd.f32 0.0, %v223
    %v225 = vpop.f32.mrf.mxu0
    %226 = vmatprep.mubr.f32.mxu0 0.0
    %227 = vmatmul.mubr.f32.gmra.mxu0 %v147
    %v228 = vpop.f32.mrf.mxu0
    %v229 = vadd.f32 0.0, %v228
    %v230 = vpop.f32.mrf.mxu0
    %231 = vmatprep.mubr.f32.mxu0 0.0
    %232 = vmatmul.mubr.f32.gmra.mxu0 %v150
    %v233 = vpop.f32.mrf.mxu0
    %v234 = vadd.f32 0.0, %v233
    %v235 = vpop.f32.mrf.mxu0
    %236 = vdwg.mxu0
    %v237 = vrcp.pop %v219
    %v238 = vmul.f32 1.0, %v237
    %v239 = vrcp.pop %v224
    %v240 = vmul.f32 1.0, %v239
    %242 = vset.pattern.permute.xlu0 3
    %243 = vperm.xlu0 %242, %v238
    %v244 = vpop.permute.xlu0 %243
    %247 = vset.pattern.permute.xlu0 3
    %248 = vperm.xlu0 %247, %v240
    %v249 = vpop.permute.xlu0 %248
    %v251 = vmul.f32 %v134, %v244
    %v252 = vmul.f32 %v136, %v249
    %v253 = vmul.f32 %v219, %v244
    %v254 = vmul.f32 %v224, %v249
    %v255 = vmax.f32 %v229, 1.0
    %v256 = vmax.f32 %v234, 1.0
    %258 = vset.pattern.permute.xlu0 3
    %259 = vperm.xlu0 %258, %v255
    %v260 = vpop.permute.xlu0 %259
    %263 = vset.pattern.permute.xlu0 3
    %264 = vperm.xlu0 %263, %v256
    %v265 = vpop.permute.xlu0 %264
    %v267 = vrcp.pop %v260
    %v268 = vmul.f32 %v253, %v267
    %v269 = vrcp.pop %v265
    %v270 = vmul.f32 %v254, %v269
    %v271 = vlaneseq
    %v272 = vshrl.u32 %v271, 7
    %v273 = vsub.s32 0, %v272
    %v274 = vrot.slane %v96, %v273
    %v275 = vmul.f32 %v251, %v274
    %v276 = vmul.f32 %v252, %v274
    %v277 = vadd.f32 %v275, %v116
    %v278 = vadd.f32 %v276, %v117
    %v279 = vsel %vm124, %v277, -inf
    %280 = vmax.xlane.f32.xlu0 %v279
    %v281 = vpop.xlane.xlu0 %280
    %v282 = vsel %vm124, %v278, -inf
    %283 = vmax.xlane.f32.xlu0 %v282
    %v284 = vpop.xlane.xlu0 %283
    %v285 = vsub.f32 %v275, %v116
    %v286 = vsub.f32 %v276, %v117
    %v287 = vsel %vm124, %v285, inf
    %288 = vmin.xlane.f32.xlu0 %v287
    %v289 = vpop.xlane.xlu0 %288
    %v290 = vsel %vm124, %v286, inf
    %291 = vmin.xlane.f32.xlu0 %v290
    %v292 = vpop.xlane.xlu0 %291
    %v293 = vlaneseq
    %v294 = vshrl.u32 %v293, 7
    %v295 = vsub.s32 1, %v294
    %v296 = vrot.slane %v96, %v295
    %v297 = vmul.f32 %v251, %v296
    %v298 = vmul.f32 %v252, %v296
    %v299 = vadd.f32 %v297, %v116
    %v300 = vadd.f32 %v298, %v117
    %v301 = vsel %vm124, %v299, -inf
    %302 = vmax.xlane.f32.xlu0 %v301
    %v303 = vpop.xlane.xlu0 %302
    %v304 = vsel %vm124, %v300, -inf
    %305 = vmax.xlane.f32.xlu0 %v304
    %v306 = vpop.xlane.xlu0 %305
    %v307 = vsub.f32 %v297, %v116
    %v308 = vsub.f32 %v298, %v117
    %v309 = vsel %vm124, %v307, inf
    %310 = vmin.xlane.f32.xlu0 %v309
    %v311 = vpop.xlane.xlu0 %310
    %v312 = vsel %vm124, %v308, inf
    %313 = vmin.xlane.f32.xlu0 %v312
    %v314 = vpop.xlane.xlu0 %313
    %v315 = vlaneseq
    %v316 = vshrl.u32 %v315, 7
    %v317 = vsub.s32 2, %v316
    %v318 = vrot.slane %v96, %v317
    %v319 = vmul.f32 %v251, %v318
    %v320 = vmul.f32 %v252, %v318
    %v321 = vadd.f32 %v319, %v116
    %v322 = vadd.f32 %v320, %v117
    %v323 = vsel %vm124, %v321, -inf
    %324 = vmax.xlane.f32.xlu0 %v323
    %v325 = vpop.xlane.xlu0 %324
    %v326 = vsel %vm124, %v322, -inf
    %327 = vmax.xlane.f32.xlu0 %v326
    %v328 = vpop.xlane.xlu0 %327
    %v329 = vsub.f32 %v319, %v116
    %v330 = vsub.f32 %v320, %v117
    %v331 = vsel %vm124, %v329, inf
    %332 = vmin.xlane.f32.xlu0 %v331
    %v333 = vpop.xlane.xlu0 %332
    %v334 = vsel %vm124, %v330, inf
    %335 = vmin.xlane.f32.xlu0 %v334
    %v336 = vpop.xlane.xlu0 %335
    %vm337 = vcmask 7168
    %v338 = vsel %vm337, %v281, %v303
    %v339 = vsel %vm337, %v284, %v306
    %vm340 = vcmask 15360
    %v341 = vsel %vm340, %v338, %v325
    %v342 = vsel %vm340, %v339, %v328
    %v343 = vsel %vm337, %v289, %v311
    %v344 = vsel %vm337, %v292, %v314
    %v345 = vsel %vm340, %v343, %v333
    %v346 = vsel %vm340, %v344, %v336
    %349 = vrot.lane.b32.xlu0 %v341, 3
    %v350 = vpop.permute.xlu0 %349
    %351 = vrot.lane.b32.xlu0 %v342, 3
    %v352 = vpop.permute.xlu0 %351
    %357 = vrot.lane.b32.xlu0 %v253, 6
    %v358 = vpop.permute.xlu0 %357
    %359 = vrot.lane.b32.xlu0 %v254, 6
    %v360 = vpop.permute.xlu0 %359
    %365 = vrot.lane.b32.xlu0 %v345, 9
    %v366 = vpop.permute.xlu0 %365
    %367 = vrot.lane.b32.xlu0 %v346, 9
    %v368 = vpop.permute.xlu0 %367
    %v371 = vsel %vm137, %v268, %v350
    %v372 = vsel %vm137, %v270, %v352
    %vm373 = vcmask 48128
    %v374 = vsel %vm373, %v371, %v358
    %v375 = vsel %vm373, %v372, %v360
    %vm376 = vcmask 72704
    %v377 = vsel %vm376, %v374, %v366
    %v378 = vsel %vm376, %v375, %v368
    %vm379 = vcmp.gt.f32.partialorder %v229, 0.0
    %vm380 = vcmp.gt.f32.partialorder %v234, 0.0
    %v381 = vsel %vm379, 1, 0
    %v382 = vsel %vm380, 1, 0
    %383 = vset.pattern.permute.xlu0 3
    %384 = vperm.xlu0 %383, %v381
    %v385 = vpop.permute.xlu0 %384
    %386 = vset.pattern.permute.xlu0 3
    %387 = vperm.xlu0 %386, %v382
    %v388 = vpop.permute.xlu0 %387
    %vm389 = vcmp.eq.s32.totalorder %v385, 1
    %vm390 = vcmp.eq.s32.totalorder %v388, 1
    %v391 = vsel %vm389, %v377, 0.0
    %v392 = vsel %vm390, %v378, 0.0
    %393 = vrot.lane.b32.xlu0 %v18, 3
    %v394 = vpop.permute.xlu0 %393
    %395 = vrot.lane.b32.xlu0 %v19, 3
    %v396 = vpop.permute.xlu0 %395
    %399 = vrot.lane.b32.xlu0 %v18, 6
    %v400 = vpop.permute.xlu0 %399
    %401 = vrot.lane.b32.xlu0 %v19, 6
    %v402 = vpop.permute.xlu0 %401
    %405 = vrot.lane.b32.xlu0 %v18, 9
    %v406 = vpop.permute.xlu0 %405
    %407 = vrot.lane.b32.xlu0 %v19, 9
    %v408 = vpop.permute.xlu0 %407
    %v411 = vsel %vm137, %v18, %v394
    %v412 = vsel %vm137, %v19, %v396
    %v413 = vsel %vm373, %v411, %v400
    %v414 = vsel %vm373, %v412, %v402
    %v415 = vsel %vm376, %v413, %v406
    %v416 = vsel %vm376, %v414, %v408
    %v417 = vadd.f32 %v391, %v415
    %v418 = vadd.f32 %v392, %v416
    %vm419 = vcmask 97280
    %420 = vst.msk [vmem:[#allocation2] sm:$0xff] %vm419, %v417
    %421 = vst.msk [vmem:[#allocation2 + $0x8] sm:$0xff] %vm419, %v418
    // Predicated region
    $region18: #{general_conv_forward.1} parent=1 // pred_check
      _
    $region19: #{general_conv_forward.1} parent=1 // pred_check_branch
      %423 = sbr.rel (0) target = $region21
    $region20: #{general_conv_forward.1} parent=1 // pred_region
      %s425 = ssub.s32 256, 256
      %426 = vsyncadd [#allocation3], %s425
      %s427 = sshll.u32 [#allocation2], 4
      %s428 = int_to_ptr.vmem [resolvable:$true] %s427
      %433 = dma.vmem_to_hbm [thread:$0]  %s428, 256, %s4, [#allocation3], 128, 128, 8
    $region21: #{general_conv_forward.1} parent=1 // pred_fallthru
      _
    // Predicated region
    $region22: #{general_conv_forward.1} parent=1 // pred_check
      _
    $region23: #{general_conv_forward.1} parent=1 // pred_check_branch
      %435 = sbr.rel (0) target = $region25
    $region24: #{general_conv_forward.1} parent=1 // pred_region
      %436 = dma.done [#allocation3], 256
    $region25: #{general_conv_forward.1} parent=1 // pred_fallthru
      _
    %437 = vsyncpa [#allocation3], 1

</llo_original>
